<compile_context>
chip_gen: v6e
topology: v6e:2x2x1
jax: 0.10.0
libtpu: 0.0.40
codegen_flags: <defaults>
</compile_context>

<pallas_src>
import functools
import numpy as np
import jax
import jax.numpy as jnp
from jax.experimental import pallas as pl
from jax.experimental.pallas import tpu as pltpu


def _round_up(x, m):
    return ((x + m - 1) // m) * m


def _pick_entity_tiling(N, d_e_pad, B_pad, tgt_bytes, out_bytes, *,
                        target_tile_bytes=4 << 20, max_tile_n=32768,
                        min_tile_n=512, min_tiles=4):
    """Choose the entity-axis tile so each grid step moves >= ~1-4 MiB of HBM traffic
    (streamed targets + output writeback), pads N only to 128-row granularity, and --
    when the table is big enough -- uses >= min_tiles grid steps so both v7x
    TensorCores get work.  Harmless (tiny per-step overhead) on single-TC v5e/v6e."""
    n128 = _round_up(N, 128)
    per_row_bytes = d_e_pad * tgt_bytes + B_pad * out_bytes + 4      # targets + out + bias
    cap = target_tile_bytes // per_row_bytes
    cap = max(min_tile_n, min(max_tile_n, (cap // 128) * 128))
    k = -(-n128 // cap)                                              # tiles at the byte target
    if n128 >= min_tiles * min_tile_n:
        k = max(k, min_tiles)                                        # megacore load balance
    tile_n = _round_up(-(-n128 // k), 128)
    n_pad = _round_up(n128, tile_n)
    return tile_n, n_pad


# --------------------------- stage 1: hidden query vector ---------------------------
def hyper_hidden_kernel(ent_ref, rel_ref, fc1_wT_ref, fc1_b_ref,
                        fc_wT_ref, fc_b_ref, bn0_s_ref, bn0_b_ref,
                        h_ref, *, out_c, filt_w, out_w):
    # bn0 (in_channels == 1 -> scalar scale/shift); input dropout = identity (eval).
    x = ent_ref[...] * bn0_s_ref[...] + bn0_b_ref[...]                       # (Bp, d_e)

    # Hypernetwork: per-example conv filters from the relation embedding.
    # bn1's per-channel scale is pre-folded into fc1_wT / fc1_b.
    k_flat = jnp.dot(rel_ref[...], fc1_wT_ref[...],
                     preferred_element_type=jnp.float32) + fc1_b_ref[...]    # (Bp, out_c*filt_w)

    # Hoist the filt_w shifted views of x once; reused for every output channel.
    x_shift = [x[:, w:w + out_w] for w in range(filt_w)]

    # Per-example grouped conv (groups=B, in_channels=1, filt_h=1) fused with the fc
    # layer: accumulate conv_o @ fc_wT[o] per channel instead of concatenating the
    # (out_c, out_w) feature map (avoids lane-shuffle relayouts and vreg pressure).
    # bn1's shift and bn2's affine are pre-folded into fc_wT / fc_b.
    h = jnp.zeros(h_ref.shape, jnp.float32)
    for o in range(out_c):
        base = o * filt_w
        conv_o = x_shift[0] * k_flat[:, base:base + 1]
        for w in range(1, filt_w):
            conv_o = conv_o + x_shift[w] * k_flat[:, base + w:base + w + 1]
        h = h + jnp.dot(conv_o, fc_wT_ref[o], preferred_element_type=jnp.float32)
    h = jnp.maximum(h + fc_b_ref[...], 0.0)                                  # fc bias + bn2 + relu (folded)
    h_ref[...] = h.astype(h_ref.dtype)


# ----------------------------- stage 2: entity scoring -------------------------------
def hyper_score_kernel(h_ref, tgtT_ref, bias_ref, out_ref):
    # h: (Bp, d_e_pad) bf16 resident; tgtT tile: (d_e_pad, TILE_N) bf16 streamed.
    # Plain jnp.dot with the transposed table -> natural MXU RHS, lane-dense output.
    scores = jnp.dot(h_ref[...], tgtT_ref[...],
                     preferred_element_type=jnp.float32)                     # (Bp, TILE_N)
    out_ref[...] = jax.nn.sigmoid(scores + bias_ref[...]).astype(out_ref.dtype)


# ----------------------------------- wrapper ------------------------------------------
def hyper_forward(ent, rel, targets, params, *, out_c, filt_w,
                  target_tile_bytes=4 << 20, score_dtype=jnp.bfloat16):
    """HypER eval-mode forward.  Parameter folding / padding is glue; math is in-kernel.

    For a real serving path, precompute the bf16 transposed/padded target table
    (`tgtT` below) once outside the hot loop so the cast+transpose+pad HBM passes
    are not re-done per call."""
    B, d_e = ent.shape
    N = targets.shape[0]
    out_w = d_e - filt_w + 1
    eps = 1e-5

    def fold_bn(gamma, beta, rmean, rvar):
        scale = gamma.astype(jnp.float32) / jnp.sqrt(rvar.astype(jnp.float32) + eps)
        shift = beta.astype(jnp.float32) - rmean.astype(jnp.float32) * scale
        return scale, shift

    bn0_s, bn0_b = fold_bn(*params["bn0"])                                   # scalars
    bn1_s, bn1_b = fold_bn(*params["bn1"])                                   # (out_c,)
    bn2_s, bn2_b = fold_bn(*params["bn2"])                                   # (d_e,)

    # Fold bn1's per-channel scale into the hypernetwork weights (fc1), and fold
    # bn1's shift + bn2's affine into the fc weights/bias (exact, affine-into-linear).
    fc1_wT = jnp.transpose(params["fc1_w"]).astype(jnp.float32)              # (d_r, out_c*filt_w)
    col_scale = jnp.repeat(bn1_s, filt_w)                                    # (out_c*filt_w,)
    fc1_wT_f = fc1_wT * col_scale[None, :]
    fc1_b_f = params["fc1_b"].astype(jnp.float32) * col_scale

    fc_wT = jnp.transpose(params["fc_w"]).astype(jnp.float32)                # (fc_len, d_e)
    fc_wT_r = fc_wT.reshape(out_c, out_w, d_e)                               # (out_c, out_w, d_e)
    bn1_shift_to_fc = jnp.einsum("o,owd->d", bn1_b, fc_wT_r)                 # (d_e,)
    fc_wT_f = fc_wT_r * bn2_s[None, None, :]
    fc_b_f = (params["fc_b"].astype(jnp.float32) + bn1_shift_to_fc) * bn2_s + bn2_b

    # Pad d_e to a multiple of 8 (sublane group) for the transposed target table; the
    # fc output columns are zero-padded to match so h comes out already padded.
    d_e_pad = _round_up(d_e, 8)
    if d_e_pad != d_e:
        fc_wT_f = jnp.pad(fc_wT_f, ((0, 0), (0, 0), (0, d_e_pad - d_e)))
        fc_b_f = jnp.pad(fc_b_f, ((0, d_e_pad - d_e),))

    # Pad the batch to a full f32 sublane group so the MXU/VPU see >= 8 rows.
    B_pad = _round_up(max(B, 8), 8)
    if B_pad != B:
        ent = jnp.pad(ent, ((0, B_pad - B), (0, 0)))
        rel = jnp.pad(rel, ((0, B_pad - B), (0, 0)))

    # ---- stage 1: hidden query vector (tiny, computed once, NOT per entity tile) ----
    vmem = pl.BlockSpec(memory_space=pltpu.MemorySpace.VMEM)
    hidden_kernel = functools.partial(hyper_hidden_kernel,
                                      out_c=out_c, filt_w=filt_w, out_w=out_w)
    # NOTE: h stays bf16 (two bf16 roundings before sigmoid, well within tolerance);
    # switch h to f32 here if tighter accuracy is ever needed -- it is tiny.
    h = pl.pallas_call(
        hidden_kernel,
        out_shape=jax.ShapeDtypeStruct((B_pad, d_e_pad), score_dtype),
        in_specs=[vmem] * 8,
        out_specs=vmem,
    )(ent.astype(jnp.float32), rel.astype(jnp.float32),
      fc1_wT_f, fc1_b_f.reshape(1, -1),
      fc_wT_f, fc_b_f.reshape(1, -1),
      bn0_s.reshape(1, 1), bn0_b.reshape(1, 1))

    # ---- stage 2: stream the entity table tile-by-tile over a grid on N ----
    tgt_bytes = jnp.dtype(score_dtype).itemsize
    out_bytes = jnp.dtype(score_dtype).itemsize
    tile_n, n_pad = _pick_entity_tiling(N, d_e_pad, B_pad, tgt_bytes, out_bytes,
                                        target_tile_bytes=target_tile_bytes)

    # Serving layout: bf16, padded, transposed to (d_e_pad, n_pad).  Precompute offline
    # in a real serving path (cast + transpose + pad are full-table HBM passes).
    tgtT = jnp.transpose(
        jnp.pad(targets.astype(score_dtype),
                ((0, n_pad - N), (0, d_e_pad - d_e))))                       # (d_e_pad, n_pad)
    bias = jnp.pad(params["b"].astype(jnp.float32), ((0, n_pad - N),)).reshape(1, -1)

    # VMEM budget: double-buffered streamed tile + output tile + bias tile, plus the
    # resident h.  Clamped to 56 MiB so it fits v7x's 64 MiB physical VMEM; v5e/v6e
    # (128 MiB) have ample headroom at these tile sizes.
    per_step = d_e_pad * tile_n * tgt_bytes + B_pad * tile_n * out_bytes + tile_n * 4
    vmem_need = 2 * per_step + B_pad * d_e_pad * tgt_bytes + (1 << 20)
    vmem_limit = int(min(max(2 * vmem_need, 32 << 20), 56 << 20))

    out = pl.pallas_call(
        hyper_score_kernel,
        out_shape=jax.ShapeDtypeStruct((B_pad, n_pad), score_dtype),
        grid=(n_pad // tile_n,),
        in_specs=[
            pl.BlockSpec((B_pad, d_e_pad), lambda j: (0, 0)),      # h: resident across tiles
            # NOTE: if xprof shows the targets DMA exposed between grid steps, add
            # pipeline_mode=pl.Buffered(3) here (plenty of VMEM headroom).
            pl.BlockSpec((d_e_pad, tile_n), lambda j: (0, j)),     # streamed entity tile (double-buffered)
            pl.BlockSpec((1, tile_n), lambda j: (0, j)),           # per-entity bias tile
        ],
        out_specs=pl.BlockSpec((B_pad, tile_n), lambda j: (0, j)),
        compiler_params=pltpu.CompilerParams(
            dimension_semantics=("parallel",),                     # megacore: split tiles across TCs
            vmem_limit_bytes=vmem_limit,
        ),
    )(h, tgtT, bias)

    # bf16 scores (halved writeback); callers that can consume the padded slab should
    # skip this slice to avoid the extra copy.
    return out[:B, :N]


# ------------------------------------ reference ---------------------------------------
def hyper_reference(ent, rel, targets, params, *, out_c, filt_w):
    B, d_e = ent.shape
    out_w = d_e - filt_w + 1
    eps = 1e-5

    def bn(x, gamma, beta, rmean, rvar):
        return (x - rmean) / jnp.sqrt(rvar + eps) * gamma + beta

    x = bn(ent, *params["bn0"])
    k = (rel @ params["fc1_w"].T + params["fc1_b"]).reshape(B, out_c, filt_w)
    patches = jnp.stack([x[:, j:j + filt_w] for j in range(out_w)], axis=1)   # (B, out_w, fw)
    conv = jnp.einsum("bjw,bow->boj", patches, k)                             # (B, out_c, out_w)
    conv = bn(conv, params["bn1"][0][None, :, None], params["bn1"][1][None, :, None],
              params["bn1"][2][None, :, None], params["bn1"][3][None, :, None])
    flat = conv.reshape(B, out_c * out_w)
    h = flat @ params["fc_w"].T + params["fc_b"]
    h = jnp.maximum(bn(h, *params["bn2"]), 0.0)
    scores = h @ targets.T + params["b"][None, :]
    return jax.nn.sigmoid(scores)


# --------------------------------------- main -----------------------------------------
if __name__ == "__main__":
    # small config consistent with the module (in_channels=1, filt_h=1)
    B, d_e, d_r = 2, 32, 16
    in_c, out_c, filt_h, filt_w = 1, 4, 1, 3
    num_entities = 64
    fc1_len = in_c * out_c * filt_h * filt_w                     # 12
    fc_len = (1 - filt_h + 1) * (d_e - filt_w + 1) * out_c       # 120

    key = jax.random.PRNGKey(0)
    ks = jax.random.split(key, 12)

    ent = jax.random.normal(ks[0], (B, d_e), jnp.float32)
    rel = jax.random.normal(ks[1], (B, d_r), jnp.float32)
    targets = jax.random.normal(ks[2], (num_entities, d_e), jnp.float32)

    params = {
        "fc1_w": 0.1 * jax.random.normal(ks[3], (fc1_len, d_r), jnp.float32),
        "fc1_b": 0.1 * jax.random.normal(ks[4], (fc1_len,), jnp.float32),
        "fc_w": 0.1 * jax.random.normal(ks[5], (d_e, fc_len), jnp.float32),
        "fc_b": 0.1 * jax.random.normal(ks[6], (d_e,), jnp.float32),
        # (gamma, beta, running_mean, running_var) per batch-norm, inference mode
        "bn0": (jnp.ones((1,)), jnp.zeros((1,)),
                0.1 * jax.random.normal(ks[7], (1,)), jnp.ones((1,)) + 0.1),
        "bn1": (jnp.ones((out_c,)) + 0.05, jnp.zeros((out_c,)),
                0.1 * jax.random.normal(ks[8], (out_c,)), jnp.ones((out_c,)) + 0.2),
        "bn2": (jnp.ones((d_e,)), 0.05 * jax.random.normal(ks[9], (d_e,)),
                0.1 * jax.random.normal(ks[10], (d_e,)), jnp.ones((d_e,)) + 0.3),
        "b": jnp.zeros((num_entities,), jnp.float32),   # matches nn.Parameter(torch.zeros(num_entities))
    }

    pred = hyper_forward(ent, rel, targets, params, out_c=out_c, filt_w=filt_w)
    pred = jax.block_until_ready(pred)

    ref = hyper_reference(ent, rel, targets, params, out_c=out_c, filt_w=filt_w)
    # Tolerance reflects bf16 streaming of the entity table / hidden vector and the
    # bf16 score writeback (f32 accumulation on the MXU); sigmoid outputs land well
    # within 2e-2.
    np.testing.assert_allclose(np.asarray(pred, dtype=np.float32), np.asarray(ref),
                               rtol=2e-2, atol=2e-2)

    print("KERNEL_OK")
</pallas_src>

<mosaic_0001>
module attributes {stable_mosaic.version = 11 : i64} {
  func.func @hyper_hidden_kernel(%arg0: memref<8x32xf32, #tpu.memory_space<vmem>>, %arg1: memref<8x16xf32, #tpu.memory_space<vmem>>, %arg2: memref<16x12xf32, #tpu.memory_space<vmem>>, %arg3: memref<1x12xf32, #tpu.memory_space<vmem>>, %arg4: memref<4x30x32xf32, #tpu.memory_space<vmem>>, %arg5: memref<1x32xf32, #tpu.memory_space<vmem>>, %arg6: memref<1x1xf32, #tpu.memory_space<vmem>>, %arg7: memref<1x1xf32, #tpu.memory_space<vmem>>, %arg8: memref<8x32xbf16, #tpu.memory_space<vmem>>) attributes {dimension_semantics = [], scalar_prefetch = 0 : i64, scratch_operands = 0 : i64, tpu.core_type = #tpu.core_type<tc>} {
    %c0 = arith.constant 0 : index
    %c0_0 = arith.constant 0 : index
    %0 = vector.load %arg0[%c0, %c0_0] : memref<8x32xf32, #tpu.memory_space<vmem>>, vector<8x32xf32>
    %c0_1 = arith.constant 0 : index
    %c0_2 = arith.constant 0 : index
    %1 = vector.load %arg6[%c0_1, %c0_2] : memref<1x1xf32, #tpu.memory_space<vmem>>, vector<1x1xf32>
    %2 = vector.broadcast %1 : vector<1x1xf32> to vector<8x32xf32>
    %3 = arith.mulf %0, %2 : vector<8x32xf32>
    %c0_3 = arith.constant 0 : index
    %c0_4 = arith.constant 0 : index
    %4 = vector.load %arg7[%c0_3, %c0_4] : memref<1x1xf32, #tpu.memory_space<vmem>>, vector<1x1xf32>
    %5 = vector.broadcast %4 : vector<1x1xf32> to vector<8x32xf32>
    %6 = arith.addf %3, %5 : vector<8x32xf32>
    %c0_5 = arith.constant 0 : index
    %c0_6 = arith.constant 0 : index
    %7 = vector.load %arg1[%c0_5, %c0_6] : memref<8x16xf32, #tpu.memory_space<vmem>>, vector<8x16xf32>
    %c0_7 = arith.constant 0 : index
    %c0_8 = arith.constant 0 : index
    %8 = vector.load %arg2[%c0_7, %c0_8] : memref<16x12xf32, #tpu.memory_space<vmem>>, vector<16x12xf32>
    %cst = arith.constant dense<0.000000e+00> : vector<8x12xf32>
    %9 = tpu.matmul %7, %8, %cst {dimension_numbers = #tpu.dot_dimension_numbers<[1], [0], [0], [1], [0, 0, 1, 1], [], []>} : vector<8x16xf32>, vector<16x12xf32>, vector<8x12xf32> -> vector<8x12xf32>
    %c0_9 = arith.constant 0 : index
    %c0_10 = arith.constant 0 : index
    %10 = vector.load %arg3[%c0_9, %c0_10] : memref<1x12xf32, #tpu.memory_space<vmem>>, vector<1x12xf32>
    %11 = vector.broadcast %10 : vector<1x12xf32> to vector<8x12xf32>
    %12 = arith.addf %9, %11 : vector<8x12xf32>
    %13 = vector.extract_strided_slice %6 {offsets = [0, 0], sizes = [8, 30], strides = [1, 1]} : vector<8x32xf32> to vector<8x30xf32>
    %14 = vector.extract_strided_slice %6 {offsets = [0, 1], sizes = [8, 30], strides = [1, 1]} : vector<8x32xf32> to vector<8x30xf32>
    %15 = vector.extract_strided_slice %6 {offsets = [0, 2], sizes = [8, 30], strides = [1, 1]} : vector<8x32xf32> to vector<8x30xf32>
    %cst_11 = arith.constant 0.000000e+00 : f32
    %16 = vector.broadcast %cst_11 : f32 to vector<8x32xf32>
    %17 = vector.extract_strided_slice %12 {offsets = [0, 0], sizes = [8, 1], strides = [1, 1]} : vector<8x12xf32> to vector<8x1xf32>
    %18 = vector.broadcast %17 : vector<8x1xf32> to vector<8x30xf32>
    %19 = arith.mulf %13, %18 : vector<8x30xf32>
    %20 = vector.extract_strided_slice %12 {offsets = [0, 1], sizes = [8, 1], strides = [1, 1]} : vector<8x12xf32> to vector<8x1xf32>
    %21 = vector.broadcast %20 : vector<8x1xf32> to vector<8x30xf32>
    %22 = arith.mulf %14, %21 : vector<8x30xf32>
    %23 = arith.addf %19, %22 : vector<8x30xf32>
    %24 = vector.extract_strided_slice %12 {offsets = [0, 2], sizes = [8, 1], strides = [1, 1]} : vector<8x12xf32> to vector<8x1xf32>
    %25 = vector.broadcast %24 : vector<8x1xf32> to vector<8x30xf32>
    %26 = arith.mulf %15, %25 : vector<8x30xf32>
    %27 = arith.addf %23, %26 : vector<8x30xf32>
    %c0_12 = arith.constant 0 : index
    %c0_13 = arith.constant 0 : index
    %c0_14 = arith.constant 0 : index
    %28 = vector.load %arg4[%c0_12, %c0_13, %c0_14] : memref<4x30x32xf32, #tpu.memory_space<vmem>>, vector<1x30x32xf32>
    %29 = vector.shape_cast %28 : vector<1x30x32xf32> to vector<30x32xf32>
    %cst_15 = arith.constant dense<0.000000e+00> : vector<8x32xf32>
    %30 = tpu.matmul %27, %29, %cst_15 {dimension_numbers = #tpu.dot_dimension_numbers<[1], [0], [0], [1], [0, 0, 1, 1], [], []>} : vector<8x30xf32>, vector<30x32xf32>, vector<8x32xf32> -> vector<8x32xf32>
    %31 = arith.addf %16, %30 : vector<8x32xf32>
    %32 = vector.extract_strided_slice %12 {offsets = [0, 3], sizes = [8, 1], strides = [1, 1]} : vector<8x12xf32> to vector<8x1xf32>
    %33 = vector.broadcast %32 : vector<8x1xf32> to vector<8x30xf32>
    %34 = arith.mulf %13, %33 : vector<8x30xf32>
    %35 = vector.extract_strided_slice %12 {offsets = [0, 4], sizes = [8, 1], strides = [1, 1]} : vector<8x12xf32> to vector<8x1xf32>
    %36 = vector.broadcast %35 : vector<8x1xf32> to vector<8x30xf32>
    %37 = arith.mulf %14, %36 : vector<8x30xf32>
    %38 = arith.addf %34, %37 : vector<8x30xf32>
    %39 = vector.extract_strided_slice %12 {offsets = [0, 5], sizes = [8, 1], strides = [1, 1]} : vector<8x12xf32> to vector<8x1xf32>
    %40 = vector.broadcast %39 : vector<8x1xf32> to vector<8x30xf32>
    %41 = arith.mulf %15, %40 : vector<8x30xf32>
    %42 = arith.addf %38, %41 : vector<8x30xf32>
    %c1 = arith.constant 1 : index
    %c0_16 = arith.constant 0 : index
    %c0_17 = arith.constant 0 : index
    %43 = vector.load %arg4[%c1, %c0_16, %c0_17] : memref<4x30x32xf32, #tpu.memory_space<vmem>>, vector<1x30x32xf32>
    %44 = vector.shape_cast %43 : vector<1x30x32xf32> to vector<30x32xf32>
    %cst_18 = arith.constant dense<0.000000e+00> : vector<8x32xf32>
    %45 = tpu.matmul %42, %44, %cst_18 {dimension_numbers = #tpu.dot_dimension_numbers<[1], [0], [0], [1], [0, 0, 1, 1], [], []>} : vector<8x30xf32>, vector<30x32xf32>, vector<8x32xf32> -> vector<8x32xf32>
    %46 = arith.addf %31, %45 : vector<8x32xf32>
    %47 = vector.extract_strided_slice %12 {offsets = [0, 6], sizes = [8, 1], strides = [1, 1]} : vector<8x12xf32> to vector<8x1xf32>
    %48 = vector.broadcast %47 : vector<8x1xf32> to vector<8x30xf32>
    %49 = arith.mulf %13, %48 : vector<8x30xf32>
    %50 = vector.extract_strided_slice %12 {offsets = [0, 7], sizes = [8, 1], strides = [1, 1]} : vector<8x12xf32> to vector<8x1xf32>
    %51 = vector.broadcast %50 : vector<8x1xf32> to vector<8x30xf32>
    %52 = arith.mulf %14, %51 : vector<8x30xf32>
    %53 = arith.addf %49, %52 : vector<8x30xf32>
    %54 = vector.extract_strided_slice %12 {offsets = [0, 8], sizes = [8, 1], strides = [1, 1]} : vector<8x12xf32> to vector<8x1xf32>
    %55 = vector.broadcast %54 : vector<8x1xf32> to vector<8x30xf32>
    %56 = arith.mulf %15, %55 : vector<8x30xf32>
    %57 = arith.addf %53, %56 : vector<8x30xf32>
    %c2 = arith.constant 2 : index
    %c0_19 = arith.constant 0 : index
    %c0_20 = arith.constant 0 : index
    %58 = vector.load %arg4[%c2, %c0_19, %c0_20] : memref<4x30x32xf32, #tpu.memory_space<vmem>>, vector<1x30x32xf32>
    %59 = vector.shape_cast %58 : vector<1x30x32xf32> to vector<30x32xf32>
    %cst_21 = arith.constant dense<0.000000e+00> : vector<8x32xf32>
    %60 = tpu.matmul %57, %59, %cst_21 {dimension_numbers = #tpu.dot_dimension_numbers<[1], [0], [0], [1], [0, 0, 1, 1], [], []>} : vector<8x30xf32>, vector<30x32xf32>, vector<8x32xf32> -> vector<8x32xf32>
    %61 = arith.addf %46, %60 : vector<8x32xf32>
    %62 = vector.extract_strided_slice %12 {offsets = [0, 9], sizes = [8, 1], strides = [1, 1]} : vector<8x12xf32> to vector<8x1xf32>
    %63 = vector.broadcast %62 : vector<8x1xf32> to vector<8x30xf32>
    %64 = arith.mulf %13, %63 : vector<8x30xf32>
    %65 = vector.extract_strided_slice %12 {offsets = [0, 10], sizes = [8, 1], strides = [1, 1]} : vector<8x12xf32> to vector<8x1xf32>
    %66 = vector.broadcast %65 : vector<8x1xf32> to vector<8x30xf32>
    %67 = arith.mulf %14, %66 : vector<8x30xf32>
    %68 = arith.addf %64, %67 : vector<8x30xf32>
    %69 = vector.extract_strided_slice %12 {offsets = [0, 11], sizes = [8, 1], strides = [1, 1]} : vector<8x12xf32> to vector<8x1xf32>
    %70 = vector.broadcast %69 : vector<8x1xf32> to vector<8x30xf32>
    %71 = arith.mulf %15, %70 : vector<8x30xf32>
    %72 = arith.addf %68, %71 : vector<8x30xf32>
    %c3 = arith.constant 3 : index
    %c0_22 = arith.constant 0 : index
    %c0_23 = arith.constant 0 : index
    %73 = vector.load %arg4[%c3, %c0_22, %c0_23] : memref<4x30x32xf32, #tpu.memory_space<vmem>>, vector<1x30x32xf32>
    %74 = vector.shape_cast %73 : vector<1x30x32xf32> to vector<30x32xf32>
    %cst_24 = arith.constant dense<0.000000e+00> : vector<8x32xf32>
    %75 = tpu.matmul %72, %74, %cst_24 {dimension_numbers = #tpu.dot_dimension_numbers<[1], [0], [0], [1], [0, 0, 1, 1], [], []>} : vector<8x30xf32>, vector<30x32xf32>, vector<8x32xf32> -> vector<8x32xf32>
    %76 = arith.addf %61, %75 : vector<8x32xf32>
    %c0_25 = arith.constant 0 : index
    %c0_26 = arith.constant 0 : index
    %77 = vector.load %arg5[%c0_25, %c0_26] : memref<1x32xf32, #tpu.memory_space<vmem>>, vector<1x32xf32>
    %78 = vector.broadcast %77 : vector<1x32xf32> to vector<8x32xf32>
    %79 = arith.addf %76, %78 : vector<8x32xf32>
    %cst_27 = arith.constant 0.000000e+00 : f32
    %80 = vector.broadcast %cst_27 : f32 to vector<8x32xf32>
    %81 = arith.maximumf %79, %80 : vector<8x32xf32>
    %82 = arith.truncf %81 : vector<8x32xf32> to vector<8x32xbf16>
    %c0_28 = arith.constant 0 : index
    %c0_29 = arith.constant 0 : index
    %83 = vector.load %arg8[%c0_28, %c0_29] : memref<8x32xbf16, #tpu.memory_space<vmem>>, vector<8x32xbf16>
    tpu.vector_store %arg8[%c0_28, %c0_29], %82 {strides = array<i32>} : memref<8x32xbf16, #tpu.memory_space<vmem>>, vector<8x32xbf16>,
    return
  }
}

</mosaic_0001>

<llo_original>
// kernel: tpu_custom_call.1
$region0: #{tpu_custom_call.1}
  #allocation0 [shape = 'u32[]', space=smem, size = 0x4, offset = 0x4, fixed_abs, tag = 'smem constant byte address 0x4 - core index']
  #allocation1 [shape = 'u32[144,128]{1,0:T(1,128)}', space=vmem, size = 0x12000, scoped, tag = 'internal scratch']
  #allocation2 [shape = 'f32[1,1]{1,0:T(1,128)S(1)}', space=vmem, size = 0x200, scoped, tag = 'scoped memory for tpu_custom_call.1']
  #allocation3 [shape = 'f32[1,1]{1,0:T(1,128)S(1)}', space=vmem, size = 0x200, scoped, tag = 'scoped memory for tpu_custom_call.1']
  %s0 = inlined_call_operand.vmem [shape: f32[8,32], index: 0, kind: input, shape index: {}]
  %s1 = inlined_call_operand.vmem [shape: f32[8,16], index: 1, kind: input, shape index: {}]
  %s2 = inlined_call_operand.vmem [shape: f32[16,12], index: 2, kind: input, shape index: {}]
  %s3 = inlined_call_operand.vmem [shape: f32[1,12], index: 3, kind: input, shape index: {}]
  %s4 = inlined_call_operand.vmem [shape: f32[4,30,32], index: 4, kind: input, shape index: {}]
  %s5 = inlined_call_operand.vmem [shape: f32[1,32], index: 5, kind: input, shape index: {}]
  %s6 = inlined_call_operand.<no memory space> [shape: f32[1,1], index: 6, kind: input, shape index: {}]
  %s7 = inlined_call_operand.<no memory space> [shape: f32[1,1], index: 7, kind: input, shape index: {}]
  %s8 = inlined_call_operand.hbm [shape: bf16[8,32], index: 8, kind: output, shape index: {}]
  %s9 = sld [smem:[#allocation0]]
  $region42: #{tpu_custom_call.1} parent=0
    _
  %s11 = ssub.s32 1, %s9
  %s12 = scalar_select 0, %s11, %s9
  %v13 = vstv %s6
  %14 = vst [vmem:[#allocation2] sm:$0x1] %v13
  %v15 = vstv %s7
  %16 = vst [vmem:[#allocation3] sm:$0x1] %v15
  $region1: #{tpu_custom_call.1} parent=0
    #allocation4 [shape = 'u8[2048]{0}', space=vmem, size = 0x800, scoped, tag = 'output window, operand 0, single buffered']
    #allocation5 [shape = 's32[1]{0}', space=sflag, size = 0x4, scoped, tag = 'scoped memory for tpu_custom_call.1']
    %17 = vsyncpa [#allocation5], 0
    // Predicated region
    $region2: #{tpu_custom_call.1} parent=1 // pred_check
      _
    $region3: #{tpu_custom_call.1} parent=1 // pred_check_branch
      %19 = sbr.rel (0) target = $region5
    $region4: #{tpu_custom_call.1} parent=1 // pred_region
      _
    $region5: #{tpu_custom_call.1} parent=1 // pred_fallthru
      _
    // Predicated region
    $region6: #{tpu_custom_call.1} parent=1 // pred_check
      _
    $region7: #{tpu_custom_call.1} parent=1 // pred_check_branch
      %21 = sbr.rel (0) target = $region9
    $region8: #{tpu_custom_call.1} parent=1 // pred_region
      _
    $region9: #{tpu_custom_call.1} parent=1 // pred_fallthru
      _
    // Predicated region
    $region10: #{tpu_custom_call.1} parent=1 // pred_check
      _
    $region11: #{tpu_custom_call.1} parent=1 // pred_check_branch
      %23 = sbr.rel (0) target = $region13
    $region12: #{tpu_custom_call.1} parent=1 // pred_region
      _
    $region13: #{tpu_custom_call.1} parent=1 // pred_fallthru
      _
    // Predicated region
    $region14: #{tpu_custom_call.1} parent=1 // pred_check
      _
    $region15: #{tpu_custom_call.1} parent=1 // pred_check_branch
      %25 = sbr.rel (0) target = $region17
    $region16: #{tpu_custom_call.1} parent=1 // pred_region
      _
    $region17: #{tpu_custom_call.1} parent=1 // pred_fallthru
      _
    // Predicated region
    $region18: #{tpu_custom_call.1} parent=1 // pred_check
      _
    $region19: #{tpu_custom_call.1} parent=1 // pred_check_branch
      %27 = sbr.rel (0) target = $region21
    $region20: #{tpu_custom_call.1} parent=1 // pred_region
      _
    $region21: #{tpu_custom_call.1} parent=1 // pred_fallthru
      _
    // Predicated region
    $region22: #{tpu_custom_call.1} parent=1 // pred_check
      _
    $region23: #{tpu_custom_call.1} parent=1 // pred_check_branch
      %29 = sbr.rel (0) target = $region25
    $region24: #{tpu_custom_call.1} parent=1 // pred_region
      _
    $region25: #{tpu_custom_call.1} parent=1 // pred_fallthru
      _
    // Predicated region
    $region26: #{tpu_custom_call.1} parent=1 // pred_check
      _
    $region27: #{tpu_custom_call.1} parent=1 // pred_check_branch
      %31 = sbr.rel (0) target = $region29
    $region28: #{tpu_custom_call.1} parent=1 // pred_region
      _
    $region29: #{tpu_custom_call.1} parent=1 // pred_fallthru
      _
    // Predicated region
    $region30: #{tpu_custom_call.1} parent=1 // pred_check
      _
    $region31: #{tpu_custom_call.1} parent=1 // pred_check_branch
      %33 = sbr.rel (0) target = $region33
    $region32: #{tpu_custom_call.1} parent=1 // pred_region
      _
    $region33: #{tpu_custom_call.1} parent=1 // pred_fallthru
      _
    %v34 = vld [vmem:[%s0] sm:$0xff]
    %v35 = vld [vmem:[#allocation2] sm:$0x1]
    %v37 = vlaneseq
    %v38 = vshrl.u32 %v37, 7
    %v39 = vsub.s32 0, %v38
    %v40 = vrot.slane %v35, %v39
    %41 = vset.pattern.permute.xlu0 0
    %42 = vperm.xlu0 %41, %v40
    %v43 = vpop.permute.xlu0 %42
    %v45 = vmul.f32 %v34, %v43
    %v46 = vld [vmem:[#allocation3] sm:$0x1]
    %v48 = vlaneseq
    %v49 = vshrl.u32 %v48, 7
    %v50 = vsub.s32 0, %v49
    %v51 = vrot.slane %v46, %v50
    %52 = vset.pattern.permute.xlu0 0
    %53 = vperm.xlu0 %52, %v51
    %v54 = vpop.permute.xlu0 %53
    %v56 = vadd.f32 %v45, %v54
    %v57 = vld [vmem:[%s1] sm:$0xff]
    %v58 = vld [vmem:[%s2] sm:$0xff]
    %v59 = vld [vmem:[%s2 + $0x8] sm:$0xff]
    %v60 = vld [vmem:[%s3] sm:$0x1]
    %v62 = vlaneseq
    %v63 = vshrl.u32 %v62, 7
    %v64 = vsub.s32 0, %v63
    %v65 = vrot.slane %v60, %v64
    %vm67 = vcmask 130048
    %v69 = vsel %vm67, %v57, 0
    %71 = vmatprep.subr.mxu0 0.0
    %72 = vmatpush1.msra.mxu0 0.0
    %73 = vmatprep.subr.mxu0 0.0
    %74 = vmatpush1.msra.mxu0 0.0
    %75 = vmatprep.subr.mxu0 0.0
    %76 = vmatpush1.msra.mxu0 0.0
    %77 = vmatprep.subr.mxu0 0.0
    %78 = vmatpush1.msra.mxu0 0.0
    %79 = vmatprep.subr.mxu0 0.0
    %80 = vmatpush1.msra.mxu0 0.0
    %81 = vmatprep.subr.mxu0 0.0
    %82 = vmatpush1.msra.mxu0 0.0
    %83 = vmatprep.subr.mxu0 0.0
    %84 = vmatpush1.msra.mxu0 0.0
    %85 = vmatprep.subr.mxu0 0.0
    %86 = vmatpush1.msra.mxu0 0.0
    %87 = vmatprep.subr.mxu0 0.0
    %88 = vmatpush1.msra.mxu0 0.0
    %89 = vmatprep.subr.mxu0 0.0
    %90 = vmatpush1.msra.mxu0 0.0
    %91 = vmatprep.subr.mxu0 0.0
    %92 = vmatpush1.msra.mxu0 0.0
    %93 = vmatprep.subr.mxu0 0.0
    %94 = vmatpush1.msra.mxu0 0.0
    %95 = vmatprep.subr.mxu0 0.0
    %96 = vmatpush1.msra.mxu0 0.0
    %97 = vmatprep.subr.mxu0 0.0
    %98 = vmatpush1.msra.mxu0 0.0
    %99 = vmatprep.subr.mxu0 0.0
    %100 = vmatpush1.msra.mxu0 %v59
    %101 = vmatprep.subr.mxu0 0.0
    %102 = vmatpush1.msra.mxu0 %v58
    %103 = vmatprep.subr.mxu0 0.0
    %104 = vmatpush2.msra.mxu0 0.0
    %105 = vmatprep.subr.mxu0 0.0
    %106 = vmatpush2.msra.mxu0 0.0
    %107 = vmatprep.subr.mxu0 0.0
    %108 = vmatpush2.msra.mxu0 0.0
    %109 = vmatprep.subr.mxu0 0.0
    %110 = vmatpush2.msra.mxu0 0.0
    %111 = vmatprep.subr.mxu0 0.0
    %112 = vmatpush2.msra.mxu0 0.0
    %113 = vmatprep.subr.mxu0 0.0
    %114 = vmatpush2.msra.mxu0 0.0
    %115 = vmatprep.subr.mxu0 0.0
    %116 = vmatpush2.msra.mxu0 0.0
    %117 = vmatprep.subr.mxu0 0.0
    %118 = vmatpush2.msra.mxu0 0.0
    %119 = vmatprep.subr.mxu0 0.0
    %120 = vmatpush2.msra.mxu0 0.0
    %121 = vmatprep.subr.mxu0 0.0
    %122 = vmatpush2.msra.mxu0 0.0
    %123 = vmatprep.subr.mxu0 0.0
    %124 = vmatpush2.msra.mxu0 0.0
    %125 = vmatprep.subr.mxu0 0.0
    %126 = vmatpush2.msra.mxu0 0.0
    %127 = vmatprep.subr.mxu0 0.0
    %128 = vmatpush2.msra.mxu0 0.0
    %129 = vmatprep.subr.mxu0 0.0
    %130 = vmatpush2.msra.mxu0 0.0
    %131 = vmatprep.subr.mxu0 0.0
    %132 = vmatpush2.msra.mxu0 0.0
    %133 = vmatprep.subr.mxu0 0.0
    %134 = vmatpush2.msra.mxu0 0.0
    %135 = vmatprep.mubr.f32.mxu0 0.0
    %136 = vmatmul.mubr.f32.gmra.mxu0 %v69
    %v137 = vpop.f32.mrf.mxu0
    %v138 = vadd.f32 %v65, %v137
    %v139 = vpop.f32.mrf.mxu0
    %140 = vdwg.mxu0
    %142 = vset.pattern.permute.xlu0 0
    %143 = vperm.xlu0 %142, %v138
    %v144 = vpop.permute.xlu0 %143
    %v146 = vmul.f32 %v56, %v144
    %147 = vset.pattern.permute.xlu0 1
    %148 = vperm.xlu0 %147, %v138
    %v149 = vpop.permute.xlu0 %148
    %v151 = vmul.f32 %v56, %v149
    %153 = vrot.lane.b32.xlu0 %v151, 127
    %v154 = vpop.permute.xlu0 %153
    %v156 = vadd.f32 %v146, %v154
    %157 = vset.pattern.permute.xlu0 2
    %158 = vperm.xlu0 %157, %v138
    %v159 = vpop.permute.xlu0 %158
    %v161 = vmul.f32 %v56, %v159
    %163 = vrot.lane.b32.xlu0 %v161, 126
    %v164 = vpop.permute.xlu0 %163
    %v166 = vadd.f32 %v156, %v164
    %v167 = vld [vmem:[%s4] sm:$0xff]
    %v168 = vld [vmem:[%s4 + $0x8] sm:$0xff]
    %v169 = vld [vmem:[%s4 + $0x10] sm:$0xff]
    %v170 = vld [vmem:[%s4 + $0x18] sm:$0x3f]
    %171 = vset.pattern.permute.xlu0 3
    %172 = vperm.xlu0 %171, %v138
    %v173 = vpop.permute.xlu0 %172
    %v175 = vmul.f32 %v56, %v173
    %176 = vset.pattern.permute.xlu0 4
    %177 = vperm.xlu0 %176, %v138
    %v178 = vpop.permute.xlu0 %177
    %v180 = vmul.f32 %v56, %v178
    %182 = vrot.lane.b32.xlu0 %v180, 127
    %v183 = vpop.permute.xlu0 %182
    %v185 = vadd.f32 %v175, %v183
    %186 = vset.pattern.permute.xlu0 5
    %187 = vperm.xlu0 %186, %v138
    %v188 = vpop.permute.xlu0 %187
    %v190 = vmul.f32 %v56, %v188
    %192 = vrot.lane.b32.xlu0 %v190, 126
    %v193 = vpop.permute.xlu0 %192
    %v195 = vadd.f32 %v185, %v193
    %s196 = scalar_lea.vmem %s4, 32
    %v197 = vld [vmem:[%s196] sm:$0xff]
    %v198 = vld [vmem:[%s196 + $0x8] sm:$0xff]
    %v199 = vld [vmem:[%s196 + $0x10] sm:$0xff]
    %v200 = vld [vmem:[%s196 + $0x18] sm:$0x3f]
    %vm201 = vcmask 244736
    %v203 = vsel %vm201, %v195, 0
    %vm205 = vcmask 1045504
    %v207 = vsel %vm205, %v200, 0
    %209 = vmatprep.subr.mxu0 0.0
    %210 = vmatpush1.msra.mxu0 0.0
    %211 = vmatprep.subr.mxu0 0.0
    %212 = vmatpush1.msra.mxu0 0.0
    %213 = vmatprep.subr.mxu0 0.0
    %214 = vmatpush1.msra.mxu0 0.0
    %215 = vmatprep.subr.mxu0 0.0
    %216 = vmatpush1.msra.mxu0 0.0
    %217 = vmatprep.subr.mxu0 0.0
    %218 = vmatpush1.msra.mxu0 0.0
    %219 = vmatprep.subr.mxu0 0.0
    %220 = vmatpush1.msra.mxu0 0.0
    %221 = vmatprep.subr.mxu0 0.0
    %222 = vmatpush1.msra.mxu0 0.0
    %223 = vmatprep.subr.mxu0 0.0
    %224 = vmatpush1.msra.mxu0 0.0
    %225 = vmatprep.subr.mxu0 0.0
    %226 = vmatpush1.msra.mxu0 0.0
    %227 = vmatprep.subr.mxu0 0.0
    %228 = vmatpush1.msra.mxu0 0.0
    %229 = vmatprep.subr.mxu0 0.0
    %230 = vmatpush1.msra.mxu0 0.0
    %231 = vmatprep.subr.mxu0 0.0
    %232 = vmatpush1.msra.mxu0 0.0
    %233 = vmatprep.subr.mxu0 0.0
    %234 = vmatpush1.msra.mxu0 %v207
    %235 = vmatprep.subr.mxu0 0.0
    %236 = vmatpush1.msra.mxu0 %v199
    %237 = vmatprep.subr.mxu0 0.0
    %238 = vmatpush1.msra.mxu0 %v198
    %239 = vmatprep.subr.mxu0 0.0
    %240 = vmatpush1.msra.mxu0 %v197
    %241 = vmatprep.subr.mxu0 0.0
    %242 = vmatpush2.msra.mxu0 0.0
    %243 = vmatprep.subr.mxu0 0.0
    %244 = vmatpush2.msra.mxu0 0.0
    %245 = vmatprep.subr.mxu0 0.0
    %246 = vmatpush2.msra.mxu0 0.0
    %247 = vmatprep.subr.mxu0 0.0
    %248 = vmatpush2.msra.mxu0 0.0
    %249 = vmatprep.subr.mxu0 0.0
    %250 = vmatpush2.msra.mxu0 0.0
    %251 = vmatprep.subr.mxu0 0.0
    %252 = vmatpush2.msra.mxu0 0.0
    %253 = vmatprep.subr.mxu0 0.0
    %254 = vmatpush2.msra.mxu0 0.0
    %255 = vmatprep.subr.mxu0 0.0
    %256 = vmatpush2.msra.mxu0 0.0
    %257 = vmatprep.subr.mxu0 0.0
    %258 = vmatpush2.msra.mxu0 0.0
    %259 = vmatprep.subr.mxu0 0.0
    %260 = vmatpush2.msra.mxu0 0.0
    %261 = vmatprep.subr.mxu0 0.0
    %262 = vmatpush2.msra.mxu0 0.0
    %263 = vmatprep.subr.mxu0 0.0
    %264 = vmatpush2.msra.mxu0 0.0
    %265 = vmatprep.subr.mxu0 0.0
    %266 = vmatpush2.msra.mxu0 0.0
    %267 = vmatprep.subr.mxu0 0.0
    %268 = vmatpush2.msra.mxu0 0.0
    %269 = vmatprep.subr.mxu0 0.0
    %270 = vmatpush2.msra.mxu0 0.0
    %271 = vmatprep.subr.mxu0 0.0
    %272 = vmatpush2.msra.mxu0 0.0
    %273 = vmatprep.mubr.f32.mxu0 0.0
    %274 = vmatmul.mubr.f32.gmra.mxu0 %v203
    %v275 = vpop.f32.mrf.mxu0
    %v276 = vadd.f32 0.0, %v275
    %v277 = vpop.f32.mrf.mxu0
    %278 = vdwg.mxu0
    %v280 = vsel %vm201, %v166, 0
    %v283 = vsel %vm205, %v170, 0
    %285 = vmatprep.subr.mxu0 0.0
    %286 = vmatpush1.msra.mxu0 0.0
    %287 = vmatprep.subr.mxu0 0.0
    %288 = vmatpush1.msra.mxu0 0.0
    %289 = vmatprep.subr.mxu0 0.0
    %290 = vmatpush1.msra.mxu0 0.0
    %291 = vmatprep.subr.mxu0 0.0
    %292 = vmatpush1.msra.mxu0 0.0
    %293 = vmatprep.subr.mxu0 0.0
    %294 = vmatpush1.msra.mxu0 0.0
    %295 = vmatprep.subr.mxu0 0.0
    %296 = vmatpush1.msra.mxu0 0.0
    %297 = vmatprep.subr.mxu0 0.0
    %298 = vmatpush1.msra.mxu0 0.0
    %299 = vmatprep.subr.mxu0 0.0
    %300 = vmatpush1.msra.mxu0 0.0
    %301 = vmatprep.subr.mxu0 0.0
    %302 = vmatpush1.msra.mxu0 0.0
    %303 = vmatprep.subr.mxu0 0.0
    %304 = vmatpush1.msra.mxu0 0.0
    %305 = vmatprep.subr.mxu0 0.0
    %306 = vmatpush1.msra.mxu0 0.0
    %307 = vmatprep.subr.mxu0 0.0
    %308 = vmatpush1.msra.mxu0 0.0
    %309 = vmatprep.subr.mxu0 0.0
    %310 = vmatpush1.msra.mxu0 %v283
    %311 = vmatprep.subr.mxu0 0.0
    %312 = vmatpush1.msra.mxu0 %v169
    %313 = vmatprep.subr.mxu0 0.0
    %314 = vmatpush1.msra.mxu0 %v168
    %315 = vmatprep.subr.mxu0 0.0
    %316 = vmatpush1.msra.mxu0 %v167
    %317 = vmatprep.subr.mxu0 0.0
    %318 = vmatpush2.msra.mxu0 0.0
    %319 = vmatprep.subr.mxu0 0.0
    %320 = vmatpush2.msra.mxu0 0.0
    %321 = vmatprep.subr.mxu0 0.0
    %322 = vmatpush2.msra.mxu0 0.0
    %323 = vmatprep.subr.mxu0 0.0
    %324 = vmatpush2.msra.mxu0 0.0
    %325 = vmatprep.subr.mxu0 0.0
    %326 = vmatpush2.msra.mxu0 0.0
    %327 = vmatprep.subr.mxu0 0.0
    %328 = vmatpush2.msra.mxu0 0.0
    %329 = vmatprep.subr.mxu0 0.0
    %330 = vmatpush2.msra.mxu0 0.0
    %331 = vmatprep.subr.mxu0 0.0
    %332 = vmatpush2.msra.mxu0 0.0
    %333 = vmatprep.subr.mxu0 0.0
    %334 = vmatpush2.msra.mxu0 0.0
    %335 = vmatprep.subr.mxu0 0.0
    %336 = vmatpush2.msra.mxu0 0.0
    %337 = vmatprep.subr.mxu0 0.0
    %338 = vmatpush2.msra.mxu0 0.0
    %339 = vmatprep.subr.mxu0 0.0
    %340 = vmatpush2.msra.mxu0 0.0
    %341 = vmatprep.subr.mxu0 0.0
    %342 = vmatpush2.msra.mxu0 0.0
    %343 = vmatprep.subr.mxu0 0.0
    %344 = vmatpush2.msra.mxu0 0.0
    %345 = vmatprep.subr.mxu0 0.0
    %346 = vmatpush2.msra.mxu0 0.0
    %347 = vmatprep.subr.mxu0 0.0
    %348 = vmatpush2.msra.mxu0 0.0
    %349 = vmatprep.mubr.f32.mxu0 0.0
    %350 = vmatmul.mubr.f32.gmra.mxu0 %v280
    %v351 = vpop.f32.mrf.mxu0
    %v352 = vadd.f32 %v276, %v351
    %v353 = vpop.f32.mrf.mxu0
    %354 = vdwg.mxu0
    %355 = vset.pattern.permute.xlu0 6
    %356 = vperm.xlu0 %355, %v138
    %v357 = vpop.permute.xlu0 %356
    %v359 = vmul.f32 %v56, %v357
    %360 = vset.pattern.permute.xlu0 7
    %361 = vperm.xlu0 %360, %v138
    %v362 = vpop.permute.xlu0 %361
    %v364 = vmul.f32 %v56, %v362
    %366 = vrot.lane.b32.xlu0 %v364, 127
    %v367 = vpop.permute.xlu0 %366
    %v369 = vadd.f32 %v359, %v367
    %370 = vset.pattern.permute.xlu0 8
    %371 = vperm.xlu0 %370, %v138
    %v372 = vpop.permute.xlu0 %371
    %v374 = vmul.f32 %v56, %v372
    %376 = vrot.lane.b32.xlu0 %v374, 126
    %v377 = vpop.permute.xlu0 %376
    %v379 = vadd.f32 %v369, %v377
    %s380 = scalar_lea.vmem %s4, 64
    %v381 = vld [vmem:[%s380] sm:$0xff]
    %v382 = vld [vmem:[%s380 + $0x8] sm:$0xff]
    %v383 = vld [vmem:[%s380 + $0x10] sm:$0xff]
    %v384 = vld [vmem:[%s380 + $0x18] sm:$0x3f]
    %v386 = vsel %vm201, %v379, 0
    %v389 = vsel %vm205, %v384, 0
    %391 = vmatprep.subr.mxu0 0.0
    %392 = vmatpush1.msra.mxu0 0.0
    %393 = vmatprep.subr.mxu0 0.0
    %394 = vmatpush1.msra.mxu0 0.0
    %395 = vmatprep.subr.mxu0 0.0
    %396 = vmatpush1.msra.mxu0 0.0
    %397 = vmatprep.subr.mxu0 0.0
    %398 = vmatpush1.msra.mxu0 0.0
    %399 = vmatprep.subr.mxu0 0.0
    %400 = vmatpush1.msra.mxu0 0.0
    %401 = vmatprep.subr.mxu0 0.0
    %402 = vmatpush1.msra.mxu0 0.0
    %403 = vmatprep.subr.mxu0 0.0
    %404 = vmatpush1.msra.mxu0 0.0
    %405 = vmatprep.subr.mxu0 0.0
    %406 = vmatpush1.msra.mxu0 0.0
    %407 = vmatprep.subr.mxu0 0.0
    %408 = vmatpush1.msra.mxu0 0.0
    %409 = vmatprep.subr.mxu0 0.0
    %410 = vmatpush1.msra.mxu0 0.0
    %411 = vmatprep.subr.mxu0 0.0
    %412 = vmatpush1.msra.mxu0 0.0
    %413 = vmatprep.subr.mxu0 0.0
    %414 = vmatpush1.msra.mxu0 0.0
    %415 = vmatprep.subr.mxu0 0.0
    %416 = vmatpush1.msra.mxu0 %v389
    %417 = vmatprep.subr.mxu0 0.0
    %418 = vmatpush1.msra.mxu0 %v383
    %419 = vmatprep.subr.mxu0 0.0
    %420 = vmatpush1.msra.mxu0 %v382
    %421 = vmatprep.subr.mxu0 0.0
    %422 = vmatpush1.msra.mxu0 %v381
    %423 = vmatprep.subr.mxu0 0.0
    %424 = vmatpush2.msra.mxu0 0.0
    %425 = vmatprep.subr.mxu0 0.0
    %426 = vmatpush2.msra.mxu0 0.0
    %427 = vmatprep.subr.mxu0 0.0
    %428 = vmatpush2.msra.mxu0 0.0
    %429 = vmatprep.subr.mxu0 0.0
    %430 = vmatpush2.msra.mxu0 0.0
    %431 = vmatprep.subr.mxu0 0.0
    %432 = vmatpush2.msra.mxu0 0.0
    %433 = vmatprep.subr.mxu0 0.0
    %434 = vmatpush2.msra.mxu0 0.0
    %435 = vmatprep.subr.mxu0 0.0
    %436 = vmatpush2.msra.mxu0 0.0
    %437 = vmatprep.subr.mxu0 0.0
    %438 = vmatpush2.msra.mxu0 0.0
    %439 = vmatprep.subr.mxu0 0.0
    %440 = vmatpush2.msra.mxu0 0.0
    %441 = vmatprep.subr.mxu0 0.0
    %442 = vmatpush2.msra.mxu0 0.0
    %443 = vmatprep.subr.mxu0 0.0
    %444 = vmatpush2.msra.mxu0 0.0
    %445 = vmatprep.subr.mxu0 0.0
    %446 = vmatpush2.msra.mxu0 0.0
    %447 = vmatprep.subr.mxu0 0.0
    %448 = vmatpush2.msra.mxu0 0.0
    %449 = vmatprep.subr.mxu0 0.0
    %450 = vmatpush2.msra.mxu0 0.0
    %451 = vmatprep.subr.mxu0 0.0
    %452 = vmatpush2.msra.mxu0 0.0
    %453 = vmatprep.subr.mxu0 0.0
    %454 = vmatpush2.msra.mxu0 0.0
    %455 = vmatprep.mubr.f32.mxu0 0.0
    %456 = vmatmul.mubr.f32.gmra.mxu0 %v386
    %v457 = vpop.f32.mrf.mxu0
    %v458 = vadd.f32 0.0, %v457
    %v459 = vpop.f32.mrf.mxu0
    %460 = vdwg.mxu0
    %v461 = vadd.f32 %v352, %v458
    %462 = vset.pattern.permute.xlu0 9
    %463 = vperm.xlu0 %462, %v138
    %v464 = vpop.permute.xlu0 %463
    %v466 = vmul.f32 %v56, %v464
    %467 = vset.pattern.permute.xlu0 10
    %468 = vperm.xlu0 %467, %v138
    %v469 = vpop.permute.xlu0 %468
    %v471 = vmul.f32 %v56, %v469
    %473 = vrot.lane.b32.xlu0 %v471, 127
    %v474 = vpop.permute.xlu0 %473
    %v476 = vadd.f32 %v466, %v474
    %477 = vset.pattern.permute.xlu0 11
    %478 = vperm.xlu0 %477, %v138
    %v479 = vpop.permute.xlu0 %478
    %v481 = vmul.f32 %v56, %v479
    %483 = vrot.lane.b32.xlu0 %v481, 126
    %v484 = vpop.permute.xlu0 %483
    %v486 = vadd.f32 %v476, %v484
    %s487 = scalar_lea.vmem %s4, 96
    %v488 = vld [vmem:[%s487] sm:$0xff]
    %v489 = vld [vmem:[%s487 + $0x8] sm:$0xff]
    %v490 = vld [vmem:[%s487 + $0x10] sm:$0xff]
    %v491 = vld [vmem:[%s487 + $0x18] sm:$0x3f]
    %v493 = vsel %vm201, %v486, 0
    %v496 = vsel %vm205, %v491, 0
    %498 = vmatprep.subr.mxu0 0.0
    %499 = vmatpush1.msra.mxu0 0.0
    %500 = vmatprep.subr.mxu0 0.0
    %501 = vmatpush1.msra.mxu0 0.0
    %502 = vmatprep.subr.mxu0 0.0
    %503 = vmatpush1.msra.mxu0 0.0
    %504 = vmatprep.subr.mxu0 0.0
    %505 = vmatpush1.msra.mxu0 0.0
    %506 = vmatprep.subr.mxu0 0.0
    %507 = vmatpush1.msra.mxu0 0.0
    %508 = vmatprep.subr.mxu0 0.0
    %509 = vmatpush1.msra.mxu0 0.0
    %510 = vmatprep.subr.mxu0 0.0
    %511 = vmatpush1.msra.mxu0 0.0
    %512 = vmatprep.subr.mxu0 0.0
    %513 = vmatpush1.msra.mxu0 0.0
    %514 = vmatprep.subr.mxu0 0.0
    %515 = vmatpush1.msra.mxu0 0.0
    %516 = vmatprep.subr.mxu0 0.0
    %517 = vmatpush1.msra.mxu0 0.0
    %518 = vmatprep.subr.mxu0 0.0
    %519 = vmatpush1.msra.mxu0 0.0
    %520 = vmatprep.subr.mxu0 0.0
    %521 = vmatpush1.msra.mxu0 0.0
    %522 = vmatprep.subr.mxu0 0.0
    %523 = vmatpush1.msra.mxu0 %v496
    %524 = vmatprep.subr.mxu0 0.0
    %525 = vmatpush1.msra.mxu0 %v490
    %526 = vmatprep.subr.mxu0 0.0
    %527 = vmatpush1.msra.mxu0 %v489
    %528 = vmatprep.subr.mxu0 0.0
    %529 = vmatpush1.msra.mxu0 %v488
    %530 = vmatprep.subr.mxu0 0.0
    %531 = vmatpush2.msra.mxu0 0.0
    %532 = vmatprep.subr.mxu0 0.0
    %533 = vmatpush2.msra.mxu0 0.0
    %534 = vmatprep.subr.mxu0 0.0
    %535 = vmatpush2.msra.mxu0 0.0
    %536 = vmatprep.subr.mxu0 0.0
    %537 = vmatpush2.msra.mxu0 0.0
    %538 = vmatprep.subr.mxu0 0.0
    %539 = vmatpush2.msra.mxu0 0.0
    %540 = vmatprep.subr.mxu0 0.0
    %541 = vmatpush2.msra.mxu0 0.0
    %542 = vmatprep.subr.mxu0 0.0
    %543 = vmatpush2.msra.mxu0 0.0
    %544 = vmatprep.subr.mxu0 0.0
    %545 = vmatpush2.msra.mxu0 0.0
    %546 = vmatprep.subr.mxu0 0.0
    %547 = vmatpush2.msra.mxu0 0.0
    %548 = vmatprep.subr.mxu0 0.0
    %549 = vmatpush2.msra.mxu0 0.0
    %550 = vmatprep.subr.mxu0 0.0
    %551 = vmatpush2.msra.mxu0 0.0
    %552 = vmatprep.subr.mxu0 0.0
    %553 = vmatpush2.msra.mxu0 0.0
    %554 = vmatprep.subr.mxu0 0.0
    %555 = vmatpush2.msra.mxu0 0.0
    %556 = vmatprep.subr.mxu0 0.0
    %557 = vmatpush2.msra.mxu0 0.0
    %558 = vmatprep.subr.mxu0 0.0
    %559 = vmatpush2.msra.mxu0 0.0
    %560 = vmatprep.subr.mxu0 0.0
    %561 = vmatpush2.msra.mxu0 0.0
    %562 = vmatprep.mubr.f32.mxu0 0.0
    %563 = vmatmul.mubr.f32.gmra.mxu0 %v493
    %v564 = vpop.f32.mrf.mxu0
    %v565 = vadd.f32 0.0, %v564
    %v566 = vpop.f32.mrf.mxu0
    %567 = vdwg.mxu0
    %v568 = vadd.f32 %v461, %v565
    %v569 = vld [vmem:[%s5] sm:$0x1]
    %v571 = vlaneseq
    %v572 = vshrl.u32 %v571, 7
    %v573 = vsub.s32 0, %v572
    %v574 = vrot.slane %v569, %v573
    %v576 = vadd.f32 %v568, %v574
    %v577 = vmax.f32 %v576, 0.0
    %v578 = vpack.c.bf16 %v577, %v577
    %vm579 = vcmask 257024
    %580 = vst.msk [vmem:[#allocation4] sm:$0xf] %vm579, %v578
    // Predicated region
    $region34: #{tpu_custom_call.1} parent=1 // pred_check
      _
    $region35: #{tpu_custom_call.1} parent=1 // pred_check_branch
      %582 = sbr.rel (0) target = $region37
    $region36: #{tpu_custom_call.1} parent=1 // pred_region
      %s584 = ssub.s32 64, 64
      %585 = vsyncadd [#allocation5], %s584
      %s587 = sshll.u32 [#allocation4], 4
      %s588 = int_to_ptr.vmem [resolvable:$true] %s587
      %590 = dma.vmem_to_hbm [thread:$0]  %s588, 64, %s8, [#allocation5]
    $region37: #{tpu_custom_call.1} parent=1 // pred_fallthru
      _
    // Predicated region
    $region38: #{tpu_custom_call.1} parent=1 // pred_check
      _
    $region39: #{tpu_custom_call.1} parent=1 // pred_check_branch
      %592 = sbr.rel (0) target = $region41
    $region40: #{tpu_custom_call.1} parent=1 // pred_region
      %593 = dma.done [#allocation5], 64
    $region41: #{tpu_custom_call.1} parent=1 // pred_fallthru
      _
    %594 = vsyncpa [#allocation5], 1

</llo_original>
